<compile_context>
chip_gen: v7x
topology: tpu7x:2x2x1
jax: 0.10.0
libtpu: 0.0.40
codegen_flags: <defaults>
</compile_context>

<pallas_src>
import functools

import jax
import jax.numpy as jnp
from jax.experimental import pallas as pl
from jax.experimental.pallas import tpu as pltpu

LANE = 128  # TPU lane width; output projection is padded to this.


def simple_rnn_kernel(x_ref, wxh_t_ref, whh_t_ref, b_ih_hh_ref,
                      why_t_ref, by_ref, out_ref):
    """Full sequence in one invocation (no grid); everything lives in VMEM/vregs."""
    T = x_ref.shape[0]

    # ---- 1) Batched input projection + fused biases (off the serial chain),
    #         kept in vregs (no scratch store/reload).
    #         xproj[t] = x[t] @ W_xh^T + (b_ih + b_hh)            -> (T, H)
    xproj = (jnp.dot(x_ref[...], wxh_t_ref[...],
                     preferred_element_type=jnp.float32)
             + b_ih_hh_ref[...])

    # ---- 2) Serial recurrence: only h @ W_hh^T + tanh per step.
    #         h carried in vregs; loop fully unrolled (T is small & static).
    whh_t = whh_t_ref[...]                                   # load once (H, H)

    # t = 0: initial hidden state is zero -> skip the hidden matvec entirely.
    h = jnp.tanh(xproj[0:1, :])                              # (1, H)
    hs = [h]
    for t in range(1, T):
        pre = xproj[t:t + 1, :] + jnp.dot(
            h, whh_t, preferred_element_type=jnp.float32)    # (1, H)
        h = jnp.tanh(pre)
        hs.append(h)

    # ---- 3) Batched output projection (lane-padded to 128) + one unmasked
    #         full-width store.
    h_all = jnp.concatenate(hs, axis=0)                      # (T, H) in vregs
    out_ref[...] = (
        jnp.dot(h_all, why_t_ref[...], preferred_element_type=jnp.float32)
        + by_ref[...])


def prepare_params(W_xh, W_hh, b_xh, b_hh, W_hy, b_y):
    """One-time weight prep (transpose / bias-fold / lane-pad), outside the
    per-call path so the forward graph contains only the Pallas call."""
    hidden_size = W_xh.shape[0]
    output_size = W_hy.shape[0]
    out_pad = ((output_size + LANE - 1) // LANE) * LANE      # lane-dense width

    why_t_pad = jnp.zeros((hidden_size, out_pad), jnp.float32)
    why_t_pad = why_t_pad.at[:, :output_size].set(W_hy.T.astype(jnp.float32))
    by_pad = jnp.zeros((1, out_pad), jnp.float32)
    by_pad = by_pad.at[0, :output_size].set(b_y.astype(jnp.float32))

    return (
        W_xh.T.astype(jnp.float32),                               # (I, H)
        W_hh.T.astype(jnp.float32),                               # (H, H)
        (b_xh + b_hh).reshape(1, hidden_size).astype(jnp.float32),
        why_t_pad,                                                # (H, 128)
        by_pad,                                                   # (1, 128)
    )


@functools.partial(jax.jit, static_argnames=("output_size",))
def simple_rnn_forward(x_seq, wxh_t, whh_t, b_ih_hh, why_t_pad, by_pad,
                       *, output_size):
    """Pallas wrapper mirroring SimpleRNN.forward(x_seq) with prepared params."""
    T, input_size = x_seq.shape
    hidden_size = wxh_t.shape[1]
    out_pad = why_t_pad.shape[1]

    flops = 2 * T * (input_size * hidden_size
                     + hidden_size * hidden_size
                     + hidden_size * out_pad)
    bytes_accessed = 4 * (x_seq.size + wxh_t.size + whh_t.size
                          + b_ih_hh.size + why_t_pad.size + by_pad.size
                          + T * out_pad)

    vmem_spec = pl.BlockSpec(memory_space=pltpu.MemorySpace.VMEM)
    out_padded = pl.pallas_call(
        simple_rnn_kernel,
        out_shape=jax.ShapeDtypeStruct((T, out_pad), jnp.float32),
        in_specs=[vmem_spec] * 6,
        out_specs=vmem_spec,
        cost_estimate=pl.CostEstimate(
            flops=flops,
            transcendentals=T * hidden_size,
            bytes_accessed=bytes_accessed),
    )(x_seq.astype(jnp.float32), wxh_t, whh_t, b_ih_hh, why_t_pad, by_pad)

    # Static slice back to the logical output width (outside the kernel).
    return out_padded[:, :output_size]


def simple_rnn_reference(x_seq, W_xh, W_hh, b_xh, b_hh, W_hy, b_y):
    """Pure-JAX reference with identical semantics to the PyTorch forward."""
    h = jnp.zeros((W_xh.shape[0],), jnp.float32)
    outs = []
    for t in range(x_seq.shape[0]):
        h = jnp.tanh(x_seq[t] @ W_xh.T + b_xh + h @ W_hh.T + b_hh)
        outs.append(h @ W_hy.T + b_y)
    return jnp.stack(outs)


if __name__ == "__main__":
    # Small shapes consistent with the module's forward (unbatched sequence).
    T, input_size, hidden_size, output_size = 8, 16, 32, 10

    key = jax.random.PRNGKey(0)
    kx, k1, k2, k3, k4, k5, k6 = jax.random.split(key, 7)

    # Deterministic init (PyTorch-style uniform(-1/sqrt(H), 1/sqrt(H))).
    bound = 1.0 / jnp.sqrt(jnp.float32(hidden_size))
    x_seq = jax.random.normal(kx, (T, input_size), jnp.float32)
    W_xh = jax.random.uniform(k1, (hidden_size, input_size), jnp.float32, -bound, bound)
    W_hh = jax.random.uniform(k2, (hidden_size, hidden_size), jnp.float32, -bound, bound)
    b_xh = jax.random.uniform(k3, (hidden_size,), jnp.float32, -bound, bound)
    b_hh = jax.random.uniform(k4, (hidden_size,), jnp.float32, -bound, bound)
    W_hy = jax.random.uniform(k5, (output_size, hidden_size), jnp.float32, -bound, bound)
    b_y = jax.random.uniform(k6, (output_size,), jnp.float32, -bound, bound)

    # One-time parameter prep (transpose / bias fold / lane pad), then forward.
    params = prepare_params(W_xh, W_hh, b_xh, b_hh, W_hy, b_y)
    params = jax.tree_util.tree_map(jax.block_until_ready, params)

    out = simple_rnn_forward(x_seq, *params, output_size=output_size)
    out = jax.block_until_ready(out)

    ref = simple_rnn_reference(x_seq, W_xh, W_hh, b_xh, b_hh, W_hy, b_y)
    assert out.shape == (T, output_size)
    assert jnp.allclose(out, ref, atol=1e-5, rtol=1e-5), "mismatch vs reference"

    print("KERNEL_OK")
</pallas_src>

<mosaic_0001>
module attributes {stable_mosaic.version = 11 : i64} {
  func.func @simple_rnn_kernel(%arg0: memref<8x16xf32, #tpu.memory_space<vmem>>, %arg1: memref<16x32xf32, #tpu.memory_space<vmem>>, %arg2: memref<32x32xf32, #tpu.memory_space<vmem>>, %arg3: memref<1x32xf32, #tpu.memory_space<vmem>>, %arg4: memref<32x128xf32, #tpu.memory_space<vmem>>, %arg5: memref<1x128xf32, #tpu.memory_space<vmem>>, %arg6: memref<8x128xf32, #tpu.memory_space<vmem>>) attributes {dimension_semantics = [], scalar_prefetch = 0 : i64, scratch_operands = 0 : i64, tpu.core_type = #tpu.core_type<tc>} {
    %c0 = arith.constant 0 : index
    %c0_0 = arith.constant 0 : index
    %0 = vector.load %arg0[%c0, %c0_0] : memref<8x16xf32, #tpu.memory_space<vmem>>, vector<8x16xf32>
    %c0_1 = arith.constant 0 : index
    %c0_2 = arith.constant 0 : index
    %1 = vector.load %arg1[%c0_1, %c0_2] : memref<16x32xf32, #tpu.memory_space<vmem>>, vector<16x32xf32>
    %cst = arith.constant dense<0.000000e+00> : vector<8x32xf32>
    %2 = tpu.matmul %0, %1, %cst {dimension_numbers = #tpu.dot_dimension_numbers<[1], [0], [0], [1], [0, 0, 1, 1], [], []>} : vector<8x16xf32>, vector<16x32xf32>, vector<8x32xf32> -> vector<8x32xf32>
    %c0_3 = arith.constant 0 : index
    %c0_4 = arith.constant 0 : index
    %3 = vector.load %arg3[%c0_3, %c0_4] : memref<1x32xf32, #tpu.memory_space<vmem>>, vector<1x32xf32>
    %4 = vector.broadcast %3 : vector<1x32xf32> to vector<8x32xf32>
    %5 = arith.addf %2, %4 : vector<8x32xf32>
    %c0_5 = arith.constant 0 : index
    %c0_6 = arith.constant 0 : index
    %6 = vector.load %arg2[%c0_5, %c0_6] : memref<32x32xf32, #tpu.memory_space<vmem>>, vector<32x32xf32>
    %7 = vector.extract_strided_slice %5 {offsets = [0, 0], sizes = [1, 32], strides = [1, 1]} : vector<8x32xf32> to vector<1x32xf32>
    %8 = math.tanh %7 : vector<1x32xf32>
    %9 = vector.extract_strided_slice %5 {offsets = [1, 0], sizes = [1, 32], strides = [1, 1]} : vector<8x32xf32> to vector<1x32xf32>
    %cst_7 = arith.constant dense<0.000000e+00> : vector<1x32xf32>
    %10 = tpu.matmul %8, %6, %cst_7 {dimension_numbers = #tpu.dot_dimension_numbers<[1], [0], [0], [1], [0, 0, 1, 1], [], []>} : vector<1x32xf32>, vector<32x32xf32>, vector<1x32xf32> -> vector<1x32xf32>
    %11 = arith.addf %9, %10 : vector<1x32xf32>
    %12 = math.tanh %11 : vector<1x32xf32>
    %13 = vector.extract_strided_slice %5 {offsets = [2, 0], sizes = [1, 32], strides = [1, 1]} : vector<8x32xf32> to vector<1x32xf32>
    %cst_8 = arith.constant dense<0.000000e+00> : vector<1x32xf32>
    %14 = tpu.matmul %12, %6, %cst_8 {dimension_numbers = #tpu.dot_dimension_numbers<[1], [0], [0], [1], [0, 0, 1, 1], [], []>} : vector<1x32xf32>, vector<32x32xf32>, vector<1x32xf32> -> vector<1x32xf32>
    %15 = arith.addf %13, %14 : vector<1x32xf32>
    %16 = math.tanh %15 : vector<1x32xf32>
    %17 = vector.extract_strided_slice %5 {offsets = [3, 0], sizes = [1, 32], strides = [1, 1]} : vector<8x32xf32> to vector<1x32xf32>
    %cst_9 = arith.constant dense<0.000000e+00> : vector<1x32xf32>
    %18 = tpu.matmul %16, %6, %cst_9 {dimension_numbers = #tpu.dot_dimension_numbers<[1], [0], [0], [1], [0, 0, 1, 1], [], []>} : vector<1x32xf32>, vector<32x32xf32>, vector<1x32xf32> -> vector<1x32xf32>
    %19 = arith.addf %17, %18 : vector<1x32xf32>
    %20 = math.tanh %19 : vector<1x32xf32>
    %21 = vector.extract_strided_slice %5 {offsets = [4, 0], sizes = [1, 32], strides = [1, 1]} : vector<8x32xf32> to vector<1x32xf32>
    %cst_10 = arith.constant dense<0.000000e+00> : vector<1x32xf32>
    %22 = tpu.matmul %20, %6, %cst_10 {dimension_numbers = #tpu.dot_dimension_numbers<[1], [0], [0], [1], [0, 0, 1, 1], [], []>} : vector<1x32xf32>, vector<32x32xf32>, vector<1x32xf32> -> vector<1x32xf32>
    %23 = arith.addf %21, %22 : vector<1x32xf32>
    %24 = math.tanh %23 : vector<1x32xf32>
    %25 = vector.extract_strided_slice %5 {offsets = [5, 0], sizes = [1, 32], strides = [1, 1]} : vector<8x32xf32> to vector<1x32xf32>
    %cst_11 = arith.constant dense<0.000000e+00> : vector<1x32xf32>
    %26 = tpu.matmul %24, %6, %cst_11 {dimension_numbers = #tpu.dot_dimension_numbers<[1], [0], [0], [1], [0, 0, 1, 1], [], []>} : vector<1x32xf32>, vector<32x32xf32>, vector<1x32xf32> -> vector<1x32xf32>
    %27 = arith.addf %25, %26 : vector<1x32xf32>
    %28 = math.tanh %27 : vector<1x32xf32>
    %29 = vector.extract_strided_slice %5 {offsets = [6, 0], sizes = [1, 32], strides = [1, 1]} : vector<8x32xf32> to vector<1x32xf32>
    %cst_12 = arith.constant dense<0.000000e+00> : vector<1x32xf32>
    %30 = tpu.matmul %28, %6, %cst_12 {dimension_numbers = #tpu.dot_dimension_numbers<[1], [0], [0], [1], [0, 0, 1, 1], [], []>} : vector<1x32xf32>, vector<32x32xf32>, vector<1x32xf32> -> vector<1x32xf32>
    %31 = arith.addf %29, %30 : vector<1x32xf32>
    %32 = math.tanh %31 : vector<1x32xf32>
    %33 = vector.extract_strided_slice %5 {offsets = [7, 0], sizes = [1, 32], strides = [1, 1]} : vector<8x32xf32> to vector<1x32xf32>
    %cst_13 = arith.constant dense<0.000000e+00> : vector<1x32xf32>
    %34 = tpu.matmul %32, %6, %cst_13 {dimension_numbers = #tpu.dot_dimension_numbers<[1], [0], [0], [1], [0, 0, 1, 1], [], []>} : vector<1x32xf32>, vector<32x32xf32>, vector<1x32xf32> -> vector<1x32xf32>
    %35 = arith.addf %33, %34 : vector<1x32xf32>
    %36 = math.tanh %35 : vector<1x32xf32>
    %37 = tpu.concatenate %8, %12, %16, %20, %24, %28, %32, %36 in 0 : vector<1x32xf32>, vector<1x32xf32>, vector<1x32xf32>, vector<1x32xf32>, vector<1x32xf32>, vector<1x32xf32>, vector<1x32xf32>, vector<1x32xf32> -> vector<8x32xf32>
    %c0_14 = arith.constant 0 : index
    %c0_15 = arith.constant 0 : index
    %38 = vector.load %arg4[%c0_14, %c0_15] : memref<32x128xf32, #tpu.memory_space<vmem>>, vector<32x128xf32>
    %cst_16 = arith.constant dense<0.000000e+00> : vector<8x128xf32>
    %39 = tpu.matmul %37, %38, %cst_16 {dimension_numbers = #tpu.dot_dimension_numbers<[1], [0], [0], [1], [0, 0, 1, 1], [], []>} : vector<8x32xf32>, vector<32x128xf32>, vector<8x128xf32> -> vector<8x128xf32>
    %c0_17 = arith.constant 0 : index
    %c0_18 = arith.constant 0 : index
    %40 = vector.load %arg5[%c0_17, %c0_18] : memref<1x128xf32, #tpu.memory_space<vmem>>, vector<1x128xf32>
    %41 = vector.broadcast %40 : vector<1x128xf32> to vector<8x128xf32>
    %42 = arith.addf %39, %41 : vector<8x128xf32>
    %c0_19 = arith.constant 0 : index
    %c0_20 = arith.constant 0 : index
    %43 = vector.load %arg6[%c0_19, %c0_20] : memref<8x128xf32, #tpu.memory_space<vmem>>, vector<8x128xf32>
    tpu.vector_store %arg6[%c0_19, %c0_20], %42 {strides = array<i32>} : memref<8x128xf32, #tpu.memory_space<vmem>>, vector<8x128xf32>,
    return
  }
}

</mosaic_0001>

<llo_original>
// kernel: simple_rnn_forward.1
$region0: #{simple_rnn_forward.1}
  #allocation0 [shape = 'u32[]', space=smem, size = 0x4, offset = 0x4, fixed_abs, tag = 'smem constant byte address 0x4 - core index']
  #allocation1 [shape = 'u32[144,128]{1,0:T(1,128)}', space=vmem, size = 0x12000, scoped, tag = 'internal scratch']
  %s0 = inlined_call_operand.hbm [shape: f32[8,16], index: 0, kind: input, shape index: {}]
  %s1 = inlined_call_operand.hbm [shape: f32[16,32], index: 1, kind: input, shape index: {}]
  %s2 = inlined_call_operand.hbm [shape: f32[32,32], index: 2, kind: input, shape index: {}]
  %s3 = inlined_call_operand.vmem [shape: f32[1,32], index: 3, kind: input, shape index: {}]
  %s4 = inlined_call_operand.hbm [shape: f32[32,128], index: 4, kind: input, shape index: {}]
  %s5 = inlined_call_operand.vmem [shape: f32[1,128], index: 5, kind: input, shape index: {}]
  %s6 = inlined_call_operand.hbm [shape: f32[8,128], index: 6, kind: output, shape index: {}]
  %s7 = sld [smem:[#allocation0]]
  $region50: #{simple_rnn_forward.1} parent=0
    _
  %s9 = ssub.s32 1, %s7
  %s10 = scalar_select 0, %s9, %s7
  $region1: #{simple_rnn_forward.1} parent=0
    #allocation2 [shape = 'u8[4096]{0}', space=vmem, size = 0x1000, scoped, tag = 'input window, operand 0, single buffered']
    #allocation3 [shape = 's32[1]{0}', space=sflag, size = 0x4, scoped, tag = 'scoped memory for simple_rnn_forward.1']
    #allocation4 [shape = 's32[1]{0}', space=sflag, size = 0x4, scoped, tag = 'scoped memory for simple_rnn_forward.1']
    #allocation5 [shape = 'u8[8192]{0}', space=vmem, size = 0x2000, scoped, tag = 'input window, operand 1, single buffered']
    #allocation6 [shape = 's32[1]{0}', space=sflag, size = 0x4, scoped, tag = 'scoped memory for simple_rnn_forward.1']
    #allocation7 [shape = 'u8[16384]{0}', space=vmem, size = 0x4000, scoped, tag = 'input window, operand 2, single buffered']
    #allocation8 [shape = 'u8[16384]{0}', space=vmem, size = 0x4000, scoped, tag = 'input window, operand 4, single buffered']
    #allocation9 [shape = 's32[1]{0}', space=sflag, size = 0x4, scoped, tag = 'scoped memory for simple_rnn_forward.1']
    #allocation10 [shape = 'u8[4096]{0}', space=vmem, size = 0x1000, scoped, tag = 'output window, operand 0, single buffered']
    %11 = vsyncpa [#allocation3], 0
    %12 = vsyncpa [#allocation6], 0
    %13 = vsyncpa [#allocation9], 0
    %14 = vsyncpa [#allocation4], 0
    // Predicated region
    $region2: #{simple_rnn_forward.1} parent=1 // pred_check
      _
    $region3: #{simple_rnn_forward.1} parent=1 // pred_check_branch
      %16 = sbr.rel (0) target = $region5
    $region4: #{simple_rnn_forward.1} parent=1 // pred_region
      %s18 = ssub.s32 128, 128
      %19 = vsyncadd [#allocation3], %s18
      %s21 = sshll.u32 [#allocation2], 4
      %s22 = int_to_ptr.vmem [resolvable:$true] %s21
      %24 = dma.hbm_to_vmem [thread:$0]  %s0, 128, %s22, [#allocation3]
    $region5: #{simple_rnn_forward.1} parent=1 // pred_fallthru
      _
    // Predicated region
    $region6: #{simple_rnn_forward.1} parent=1 // pred_check
      _
    $region7: #{simple_rnn_forward.1} parent=1 // pred_check_branch
      %26 = sbr.rel (0) target = $region9
    $region8: #{simple_rnn_forward.1} parent=1 // pred_region
      %s28 = ssub.s32 256, 256
      %29 = vsyncadd [#allocation6], %s28
      %s30 = sshll.u32 [#allocation5], 4
      %s31 = int_to_ptr.vmem [resolvable:$true] %s30
      %36 = dma.hbm_to_vmem [thread:$0]  %s1, 256, %s31, [#allocation6], 128, 128, 8
    $region9: #{simple_rnn_forward.1} parent=1 // pred_fallthru
      _
    // Predicated region
    $region10: #{simple_rnn_forward.1} parent=1 // pred_check
      _
    $region11: #{simple_rnn_forward.1} parent=1 // pred_check_branch
      %38 = sbr.rel (0) target = $region13
    $region12: #{simple_rnn_forward.1} parent=1 // pred_region
      %s40 = ssub.s32 512, 512
      %41 = vsyncadd [#allocation6], %s40
      %s42 = sshll.u32 [#allocation7], 4
      %s43 = int_to_ptr.vmem [resolvable:$true] %s42
      %48 = dma.hbm_to_vmem [thread:$0]  %s2, 512, %s43, [#allocation6], 128, 128, 8
    $region13: #{simple_rnn_forward.1} parent=1 // pred_fallthru
      _
    // Predicated region
    $region14: #{simple_rnn_forward.1} parent=1 // pred_check
      _
    $region15: #{simple_rnn_forward.1} parent=1 // pred_check_branch
      %50 = sbr.rel (0) target = $region17
    $region16: #{simple_rnn_forward.1} parent=1 // pred_region
      _
    $region17: #{simple_rnn_forward.1} parent=1 // pred_fallthru
      _
    // Predicated region
    $region18: #{simple_rnn_forward.1} parent=1 // pred_check
      _
    $region19: #{simple_rnn_forward.1} parent=1 // pred_check_branch
      %52 = sbr.rel (0) target = $region21
    $region20: #{simple_rnn_forward.1} parent=1 // pred_region
      %s54 = ssub.s32 512, 512
      %55 = vsyncadd [#allocation9], %s54
      %s56 = sshll.u32 [#allocation8], 4
      %s57 = int_to_ptr.vmem [resolvable:$true] %s56
      %62 = dma.hbm_to_vmem [thread:$0]  %s4, 512, %s57, [#allocation9], 128, 128, 8
    $region21: #{simple_rnn_forward.1} parent=1 // pred_fallthru
      _
    // Predicated region
    $region22: #{simple_rnn_forward.1} parent=1 // pred_check
      _
    $region23: #{simple_rnn_forward.1} parent=1 // pred_check_branch
      %64 = sbr.rel (0) target = $region25
    $region24: #{simple_rnn_forward.1} parent=1 // pred_region
      _
    $region25: #{simple_rnn_forward.1} parent=1 // pred_fallthru
      _
    // Predicated region
    $region26: #{simple_rnn_forward.1} parent=1 // pred_check
      _
    $region27: #{simple_rnn_forward.1} parent=1 // pred_check_branch
      %66 = sbr.rel (0) target = $region29
    $region28: #{simple_rnn_forward.1} parent=1 // pred_region
      %67 = dma.done [#allocation3], 128
    $region29: #{simple_rnn_forward.1} parent=1 // pred_fallthru
      _
    // Predicated region
    $region30: #{simple_rnn_forward.1} parent=1 // pred_check
      _
    $region31: #{simple_rnn_forward.1} parent=1 // pred_check_branch
      %69 = sbr.rel (0) target = $region33
    $region32: #{simple_rnn_forward.1} parent=1 // pred_region
      %70 = dma.done [#allocation6], 256
    $region33: #{simple_rnn_forward.1} parent=1 // pred_fallthru
      _
    // Predicated region
    $region34: #{simple_rnn_forward.1} parent=1 // pred_check
      _
    $region35: #{simple_rnn_forward.1} parent=1 // pred_check_branch
      %72 = sbr.rel (0) target = $region37
    $region36: #{simple_rnn_forward.1} parent=1 // pred_region
      %73 = dma.done [#allocation6], 512
    $region37: #{simple_rnn_forward.1} parent=1 // pred_fallthru
      _
    // Predicated region
    $region38: #{simple_rnn_forward.1} parent=1 // pred_check
      _
    $region39: #{simple_rnn_forward.1} parent=1 // pred_check_branch
      %75 = sbr.rel (0) target = $region41
    $region40: #{simple_rnn_forward.1} parent=1 // pred_region
      %76 = dma.done [#allocation9], 512
    $region41: #{simple_rnn_forward.1} parent=1 // pred_fallthru
      _
    %v77 = vld [vmem:[#allocation2] sm:$0xff]
    %v78 = vld [vmem:[#allocation5] sm:$0xff]
    %v79 = vld [vmem:[#allocation5 + $0x8] sm:$0xff]
    %v80 = vld [vmem:[%s3] sm:$0x1]
    %v82 = vlaneseq
    %v83 = vshrl.u32 %v82, 7
    %v84 = vsub.s32 0, %v83
    %v85 = vrot.slane %v80, %v84
    %vm87 = vcmask 130048
    %v89 = vsel %vm87, %v77, 0
    %91 = vmatprep.subr.mxu0 0.0
    %92 = vmatpush1.msra.mxu0 %v78
    %93 = vmatprep.subr.mxu0 0.0
    %94 = vmatpush1.msra.mxu0 %v79
    %95 = vmatprep.subr.mxu0 0.0
    %96 = vmatpush1.msra.mxu0 0.0
    %97 = vmatprep.subr.mxu0 0.0
    %98 = vmatpush1.msra.mxu0 0.0
    %99 = vmatprep.subr.mxu0 0.0
    %100 = vmatpush1.msra.mxu0 0.0
    %101 = vmatprep.subr.mxu0 0.0
    %102 = vmatpush1.msra.mxu0 0.0
    %103 = vmatprep.subr.mxu0 0.0
    %104 = vmatpush1.msra.mxu0 0.0
    %105 = vmatprep.subr.mxu0 0.0
    %106 = vmatpush1.msra.mxu0 0.0
    %107 = vmatprep.subr.mxu0 0.0
    %108 = vmatpush1.msra.mxu0 0.0
    %109 = vmatprep.subr.mxu0 0.0
    %110 = vmatpush1.msra.mxu0 0.0
    %111 = vmatprep.subr.mxu0 0.0
    %112 = vmatpush1.msra.mxu0 0.0
    %113 = vmatprep.subr.mxu0 0.0
    %114 = vmatpush1.msra.mxu0 0.0
    %115 = vmatprep.subr.mxu0 0.0
    %116 = vmatpush1.msra.mxu0 0.0
    %117 = vmatprep.subr.mxu0 0.0
    %118 = vmatpush1.msra.mxu0 0.0
    %119 = vmatprep.subr.mxu0 0.0
    %120 = vmatpush1.msra.mxu0 0.0
    %121 = vmatprep.subr.mxu0 0.0
    %122 = vmatpush1.msra.mxu0 0.0
    %123 = vmatprep.subr.mxu0 0.0
    %124 = vmatpush1.msra.mxu0 0.0
    %125 = vmatprep.subr.mxu0 0.0
    %126 = vmatpush1.msra.mxu0 0.0
    %127 = vmatprep.subr.mxu0 0.0
    %128 = vmatpush1.msra.mxu0 0.0
    %129 = vmatprep.subr.mxu0 0.0
    %130 = vmatpush1.msra.mxu0 0.0
    %131 = vmatprep.subr.mxu0 0.0
    %132 = vmatpush1.msra.mxu0 0.0
    %133 = vmatprep.subr.mxu0 0.0
    %134 = vmatpush1.msra.mxu0 0.0
    %135 = vmatprep.subr.mxu0 0.0
    %136 = vmatpush1.msra.mxu0 0.0
    %137 = vmatprep.subr.mxu0 0.0
    %138 = vmatpush1.msra.mxu0 0.0
    %139 = vmatprep.subr.mxu0 0.0
    %140 = vmatpush1.msra.mxu0 0.0
    %141 = vmatprep.subr.mxu0 0.0
    %142 = vmatpush1.msra.mxu0 0.0
    %143 = vmatprep.subr.mxu0 0.0
    %144 = vmatpush1.msra.mxu0 0.0
    %145 = vmatprep.subr.mxu0 0.0
    %146 = vmatpush1.msra.mxu0 0.0
    %147 = vmatprep.subr.mxu0 0.0
    %148 = vmatpush1.msra.mxu0 0.0
    %149 = vmatprep.subr.mxu0 0.0
    %150 = vmatpush1.msra.mxu0 0.0
    %151 = vmatprep.subr.mxu0 0.0
    %152 = vmatpush1.msra.mxu0 0.0
    %153 = vmatprep.subr.mxu0 0.0
    %154 = vmatpush1.msra.mxu0 0.0
    %155 = vmatprep.mubr.f32.mxu0 0.0
    %156 = vmatmul.mubr.f32.gmra.mrb[0].mxu0 %v89
    %v157 = vpop.f32.mrb[0].mxu0
    %v158 = vadd.f32 %v85, %v157
    %v159 = vpop.f32.mrb[0].mxu0
    %160 = vdwg.mxu0
    %v161 = vld [vmem:[#allocation7] sm:$0xff]
    %v162 = vld [vmem:[#allocation7 + $0x8] sm:$0xff]
    %v163 = vld [vmem:[#allocation7 + $0x10] sm:$0xff]
    %v164 = vld [vmem:[#allocation7 + $0x18] sm:$0xff]
    %v165 = vtanh.pop %v158
    %vm166 = vcmask 261120
    %v168 = vsel %vm166, %v165, 0
    %170 = vmatprep.subr.mxu0 0.0
    %171 = vmatpush1.msra.mxu0 %v161
    %172 = vmatprep.subr.mxu0 0.0
    %173 = vmatpush1.msra.mxu0 %v162
    %174 = vmatprep.subr.mxu0 0.0
    %175 = vmatpush1.msra.mxu0 %v163
    %176 = vmatprep.subr.mxu0 0.0
    %177 = vmatpush1.msra.mxu0 %v164
    %178 = vmatprep.subr.mxu0 0.0
    %179 = vmatpush1.msra.mxu0 0.0
    %180 = vmatprep.subr.mxu0 0.0
    %181 = vmatpush1.msra.mxu0 0.0
    %182 = vmatprep.subr.mxu0 0.0
    %183 = vmatpush1.msra.mxu0 0.0
    %184 = vmatprep.subr.mxu0 0.0
    %185 = vmatpush1.msra.mxu0 0.0
    %186 = vmatprep.subr.mxu0 0.0
    %187 = vmatpush1.msra.mxu0 0.0
    %188 = vmatprep.subr.mxu0 0.0
    %189 = vmatpush1.msra.mxu0 0.0
    %190 = vmatprep.subr.mxu0 0.0
    %191 = vmatpush1.msra.mxu0 0.0
    %192 = vmatprep.subr.mxu0 0.0
    %193 = vmatpush1.msra.mxu0 0.0
    %194 = vmatprep.subr.mxu0 0.0
    %195 = vmatpush1.msra.mxu0 0.0
    %196 = vmatprep.subr.mxu0 0.0
    %197 = vmatpush1.msra.mxu0 0.0
    %198 = vmatprep.subr.mxu0 0.0
    %199 = vmatpush1.msra.mxu0 0.0
    %200 = vmatprep.subr.mxu0 0.0
    %201 = vmatpush1.msra.mxu0 0.0
    %202 = vmatprep.subr.mxu0 0.0
    %203 = vmatpush1.msra.mxu0 0.0
    %204 = vmatprep.subr.mxu0 0.0
    %205 = vmatpush1.msra.mxu0 0.0
    %206 = vmatprep.subr.mxu0 0.0
    %207 = vmatpush1.msra.mxu0 0.0
    %208 = vmatprep.subr.mxu0 0.0
    %209 = vmatpush1.msra.mxu0 0.0
    %210 = vmatprep.subr.mxu0 0.0
    %211 = vmatpush1.msra.mxu0 0.0
    %212 = vmatprep.subr.mxu0 0.0
    %213 = vmatpush1.msra.mxu0 0.0
    %214 = vmatprep.subr.mxu0 0.0
    %215 = vmatpush1.msra.mxu0 0.0
    %216 = vmatprep.subr.mxu0 0.0
    %217 = vmatpush1.msra.mxu0 0.0
    %218 = vmatprep.subr.mxu0 0.0
    %219 = vmatpush1.msra.mxu0 0.0
    %220 = vmatprep.subr.mxu0 0.0
    %221 = vmatpush1.msra.mxu0 0.0
    %222 = vmatprep.subr.mxu0 0.0
    %223 = vmatpush1.msra.mxu0 0.0
    %224 = vmatprep.subr.mxu0 0.0
    %225 = vmatpush1.msra.mxu0 0.0
    %226 = vmatprep.subr.mxu0 0.0
    %227 = vmatpush1.msra.mxu0 0.0
    %228 = vmatprep.subr.mxu0 0.0
    %229 = vmatpush1.msra.mxu0 0.0
    %230 = vmatprep.subr.mxu0 0.0
    %231 = vmatpush1.msra.mxu0 0.0
    %232 = vmatprep.subr.mxu0 0.0
    %233 = vmatpush1.msra.mxu0 0.0
    %234 = vmatprep.mubr.f32.mxu0 0.0
    %235 = vmatmul.mubr.f32.gmra.mrb[0].mxu0 %v168
    %v236 = vpop.f32.mrb[0].mxu0
    %v237 = vadd.f32 0.0, %v236
    %v238 = vpop.f32.mrb[0].mxu0
    %239 = vdwg.mxu0
    %v241 = vrot.slane %v237, 7
    %v243 = vadd.f32 %v158, %v241
    %v244 = vtanh.pop %v243
    %v246 = vrot.slane %v244, 1
    %v247 = vsel %vm166, %v246, 0
    %249 = vmatprep.subr.mxu0 0.0
    %250 = vmatpush1.msra.mxu0 %v161
    %251 = vmatprep.subr.mxu0 0.0
    %252 = vmatpush1.msra.mxu0 %v162
    %253 = vmatprep.subr.mxu0 0.0
    %254 = vmatpush1.msra.mxu0 %v163
    %255 = vmatprep.subr.mxu0 0.0
    %256 = vmatpush1.msra.mxu0 %v164
    %257 = vmatprep.subr.mxu0 0.0
    %258 = vmatpush1.msra.mxu0 0.0
    %259 = vmatprep.subr.mxu0 0.0
    %260 = vmatpush1.msra.mxu0 0.0
    %261 = vmatprep.subr.mxu0 0.0
    %262 = vmatpush1.msra.mxu0 0.0
    %263 = vmatprep.subr.mxu0 0.0
    %264 = vmatpush1.msra.mxu0 0.0
    %265 = vmatprep.subr.mxu0 0.0
    %266 = vmatpush1.msra.mxu0 0.0
    %267 = vmatprep.subr.mxu0 0.0
    %268 = vmatpush1.msra.mxu0 0.0
    %269 = vmatprep.subr.mxu0 0.0
    %270 = vmatpush1.msra.mxu0 0.0
    %271 = vmatprep.subr.mxu0 0.0
    %272 = vmatpush1.msra.mxu0 0.0
    %273 = vmatprep.subr.mxu0 0.0
    %274 = vmatpush1.msra.mxu0 0.0
    %275 = vmatprep.subr.mxu0 0.0
    %276 = vmatpush1.msra.mxu0 0.0
    %277 = vmatprep.subr.mxu0 0.0
    %278 = vmatpush1.msra.mxu0 0.0
    %279 = vmatprep.subr.mxu0 0.0
    %280 = vmatpush1.msra.mxu0 0.0
    %281 = vmatprep.subr.mxu0 0.0
    %282 = vmatpush1.msra.mxu0 0.0
    %283 = vmatprep.subr.mxu0 0.0
    %284 = vmatpush1.msra.mxu0 0.0
    %285 = vmatprep.subr.mxu0 0.0
    %286 = vmatpush1.msra.mxu0 0.0
    %287 = vmatprep.subr.mxu0 0.0
    %288 = vmatpush1.msra.mxu0 0.0
    %289 = vmatprep.subr.mxu0 0.0
    %290 = vmatpush1.msra.mxu0 0.0
    %291 = vmatprep.subr.mxu0 0.0
    %292 = vmatpush1.msra.mxu0 0.0
    %293 = vmatprep.subr.mxu0 0.0
    %294 = vmatpush1.msra.mxu0 0.0
    %295 = vmatprep.subr.mxu0 0.0
    %296 = vmatpush1.msra.mxu0 0.0
    %297 = vmatprep.subr.mxu0 0.0
    %298 = vmatpush1.msra.mxu0 0.0
    %299 = vmatprep.subr.mxu0 0.0
    %300 = vmatpush1.msra.mxu0 0.0
    %301 = vmatprep.subr.mxu0 0.0
    %302 = vmatpush1.msra.mxu0 0.0
    %303 = vmatprep.subr.mxu0 0.0
    %304 = vmatpush1.msra.mxu0 0.0
    %305 = vmatprep.subr.mxu0 0.0
    %306 = vmatpush1.msra.mxu0 0.0
    %307 = vmatprep.subr.mxu0 0.0
    %308 = vmatpush1.msra.mxu0 0.0
    %309 = vmatprep.subr.mxu0 0.0
    %310 = vmatpush1.msra.mxu0 0.0
    %311 = vmatprep.subr.mxu0 0.0
    %312 = vmatpush1.msra.mxu0 0.0
    %313 = vmatprep.mubr.f32.mxu0 0.0
    %314 = vmatmul.mubr.f32.gmra.mrb[0].mxu0 %v247
    %v315 = vpop.f32.mrb[0].mxu0
    %v316 = vadd.f32 0.0, %v315
    %v317 = vpop.f32.mrb[0].mxu0
    %318 = vdwg.mxu0
    %v320 = vrot.slane %v316, 6
    %v322 = vadd.f32 %v158, %v320
    %v323 = vtanh.pop %v322
    %v325 = vrot.slane %v323, 2
    %v326 = vsel %vm166, %v325, 0
    %328 = vmatprep.subr.mxu0 0.0
    %329 = vmatpush1.msra.mxu0 %v161
    %330 = vmatprep.subr.mxu0 0.0
    %331 = vmatpush1.msra.mxu0 %v162
    %332 = vmatprep.subr.mxu0 0.0
    %333 = vmatpush1.msra.mxu0 %v163
    %334 = vmatprep.subr.mxu0 0.0
    %335 = vmatpush1.msra.mxu0 %v164
    %336 = vmatprep.subr.mxu0 0.0
    %337 = vmatpush1.msra.mxu0 0.0
    %338 = vmatprep.subr.mxu0 0.0
    %339 = vmatpush1.msra.mxu0 0.0
    %340 = vmatprep.subr.mxu0 0.0
    %341 = vmatpush1.msra.mxu0 0.0
    %342 = vmatprep.subr.mxu0 0.0
    %343 = vmatpush1.msra.mxu0 0.0
    %344 = vmatprep.subr.mxu0 0.0
    %345 = vmatpush1.msra.mxu0 0.0
    %346 = vmatprep.subr.mxu0 0.0
    %347 = vmatpush1.msra.mxu0 0.0
    %348 = vmatprep.subr.mxu0 0.0
    %349 = vmatpush1.msra.mxu0 0.0
    %350 = vmatprep.subr.mxu0 0.0
    %351 = vmatpush1.msra.mxu0 0.0
    %352 = vmatprep.subr.mxu0 0.0
    %353 = vmatpush1.msra.mxu0 0.0
    %354 = vmatprep.subr.mxu0 0.0
    %355 = vmatpush1.msra.mxu0 0.0
    %356 = vmatprep.subr.mxu0 0.0
    %357 = vmatpush1.msra.mxu0 0.0
    %358 = vmatprep.subr.mxu0 0.0
    %359 = vmatpush1.msra.mxu0 0.0
    %360 = vmatprep.subr.mxu0 0.0
    %361 = vmatpush1.msra.mxu0 0.0
    %362 = vmatprep.subr.mxu0 0.0
    %363 = vmatpush1.msra.mxu0 0.0
    %364 = vmatprep.subr.mxu0 0.0
    %365 = vmatpush1.msra.mxu0 0.0
    %366 = vmatprep.subr.mxu0 0.0
    %367 = vmatpush1.msra.mxu0 0.0
    %368 = vmatprep.subr.mxu0 0.0
    %369 = vmatpush1.msra.mxu0 0.0
    %370 = vmatprep.subr.mxu0 0.0
    %371 = vmatpush1.msra.mxu0 0.0
    %372 = vmatprep.subr.mxu0 0.0
    %373 = vmatpush1.msra.mxu0 0.0
    %374 = vmatprep.subr.mxu0 0.0
    %375 = vmatpush1.msra.mxu0 0.0
    %376 = vmatprep.subr.mxu0 0.0
    %377 = vmatpush1.msra.mxu0 0.0
    %378 = vmatprep.subr.mxu0 0.0
    %379 = vmatpush1.msra.mxu0 0.0
    %380 = vmatprep.subr.mxu0 0.0
    %381 = vmatpush1.msra.mxu0 0.0
    %382 = vmatprep.subr.mxu0 0.0
    %383 = vmatpush1.msra.mxu0 0.0
    %384 = vmatprep.subr.mxu0 0.0
    %385 = vmatpush1.msra.mxu0 0.0
    %386 = vmatprep.subr.mxu0 0.0
    %387 = vmatpush1.msra.mxu0 0.0
    %388 = vmatprep.subr.mxu0 0.0
    %389 = vmatpush1.msra.mxu0 0.0
    %390 = vmatprep.subr.mxu0 0.0
    %391 = vmatpush1.msra.mxu0 0.0
    %392 = vmatprep.mubr.f32.mxu0 0.0
    %393 = vmatmul.mubr.f32.gmra.mrb[0].mxu0 %v326
    %v394 = vpop.f32.mrb[0].mxu0
    %v395 = vadd.f32 0.0, %v394
    %v396 = vpop.f32.mrb[0].mxu0
    %397 = vdwg.mxu0
    %v399 = vrot.slane %v395, 5
    %v401 = vadd.f32 %v158, %v399
    %v402 = vtanh.pop %v401
    %v404 = vrot.slane %v402, 3
    %v405 = vsel %vm166, %v404, 0
    %407 = vmatprep.subr.mxu0 0.0
    %408 = vmatpush1.msra.mxu0 %v161
    %409 = vmatprep.subr.mxu0 0.0
    %410 = vmatpush1.msra.mxu0 %v162
    %411 = vmatprep.subr.mxu0 0.0
    %412 = vmatpush1.msra.mxu0 %v163
    %413 = vmatprep.subr.mxu0 0.0
    %414 = vmatpush1.msra.mxu0 %v164
    %415 = vmatprep.subr.mxu0 0.0
    %416 = vmatpush1.msra.mxu0 0.0
    %417 = vmatprep.subr.mxu0 0.0
    %418 = vmatpush1.msra.mxu0 0.0
    %419 = vmatprep.subr.mxu0 0.0
    %420 = vmatpush1.msra.mxu0 0.0
    %421 = vmatprep.subr.mxu0 0.0
    %422 = vmatpush1.msra.mxu0 0.0
    %423 = vmatprep.subr.mxu0 0.0
    %424 = vmatpush1.msra.mxu0 0.0
    %425 = vmatprep.subr.mxu0 0.0
    %426 = vmatpush1.msra.mxu0 0.0
    %427 = vmatprep.subr.mxu0 0.0
    %428 = vmatpush1.msra.mxu0 0.0
    %429 = vmatprep.subr.mxu0 0.0
    %430 = vmatpush1.msra.mxu0 0.0
    %431 = vmatprep.subr.mxu0 0.0
    %432 = vmatpush1.msra.mxu0 0.0
    %433 = vmatprep.subr.mxu0 0.0
    %434 = vmatpush1.msra.mxu0 0.0
    %435 = vmatprep.subr.mxu0 0.0
    %436 = vmatpush1.msra.mxu0 0.0
    %437 = vmatprep.subr.mxu0 0.0
    %438 = vmatpush1.msra.mxu0 0.0
    %439 = vmatprep.subr.mxu0 0.0
    %440 = vmatpush1.msra.mxu0 0.0
    %441 = vmatprep.subr.mxu0 0.0
    %442 = vmatpush1.msra.mxu0 0.0
    %443 = vmatprep.subr.mxu0 0.0
    %444 = vmatpush1.msra.mxu0 0.0
    %445 = vmatprep.subr.mxu0 0.0
    %446 = vmatpush1.msra.mxu0 0.0
    %447 = vmatprep.subr.mxu0 0.0
    %448 = vmatpush1.msra.mxu0 0.0
    %449 = vmatprep.subr.mxu0 0.0
    %450 = vmatpush1.msra.mxu0 0.0
    %451 = vmatprep.subr.mxu0 0.0
    %452 = vmatpush1.msra.mxu0 0.0
    %453 = vmatprep.subr.mxu0 0.0
    %454 = vmatpush1.msra.mxu0 0.0
    %455 = vmatprep.subr.mxu0 0.0
    %456 = vmatpush1.msra.mxu0 0.0
    %457 = vmatprep.subr.mxu0 0.0
    %458 = vmatpush1.msra.mxu0 0.0
    %459 = vmatprep.subr.mxu0 0.0
    %460 = vmatpush1.msra.mxu0 0.0
    %461 = vmatprep.subr.mxu0 0.0
    %462 = vmatpush1.msra.mxu0 0.0
    %463 = vmatprep.subr.mxu0 0.0
    %464 = vmatpush1.msra.mxu0 0.0
    %465 = vmatprep.subr.mxu0 0.0
    %466 = vmatpush1.msra.mxu0 0.0
    %467 = vmatprep.subr.mxu0 0.0
    %468 = vmatpush1.msra.mxu0 0.0
    %469 = vmatprep.subr.mxu0 0.0
    %470 = vmatpush1.msra.mxu0 0.0
    %471 = vmatprep.mubr.f32.mxu0 0.0
    %472 = vmatmul.mubr.f32.gmra.mrb[0].mxu0 %v405
    %v473 = vpop.f32.mrb[0].mxu0
    %v474 = vadd.f32 0.0, %v473
    %v475 = vpop.f32.mrb[0].mxu0
    %476 = vdwg.mxu0
    %v478 = vrot.slane %v474, 4
    %v480 = vadd.f32 %v158, %v478
    %v481 = vtanh.pop %v480
    %v483 = vrot.slane %v481, 4
    %v484 = vsel %vm166, %v483, 0
    %486 = vmatprep.subr.mxu0 0.0
    %487 = vmatpush1.msra.mxu0 %v161
    %488 = vmatprep.subr.mxu0 0.0
    %489 = vmatpush1.msra.mxu0 %v162
    %490 = vmatprep.subr.mxu0 0.0
    %491 = vmatpush1.msra.mxu0 %v163
    %492 = vmatprep.subr.mxu0 0.0
    %493 = vmatpush1.msra.mxu0 %v164
    %494 = vmatprep.subr.mxu0 0.0
    %495 = vmatpush1.msra.mxu0 0.0
    %496 = vmatprep.subr.mxu0 0.0
    %497 = vmatpush1.msra.mxu0 0.0
    %498 = vmatprep.subr.mxu0 0.0
    %499 = vmatpush1.msra.mxu0 0.0
    %500 = vmatprep.subr.mxu0 0.0
    %501 = vmatpush1.msra.mxu0 0.0
    %502 = vmatprep.subr.mxu0 0.0
    %503 = vmatpush1.msra.mxu0 0.0
    %504 = vmatprep.subr.mxu0 0.0
    %505 = vmatpush1.msra.mxu0 0.0
    %506 = vmatprep.subr.mxu0 0.0
    %507 = vmatpush1.msra.mxu0 0.0
    %508 = vmatprep.subr.mxu0 0.0
    %509 = vmatpush1.msra.mxu0 0.0
    %510 = vmatprep.subr.mxu0 0.0
    %511 = vmatpush1.msra.mxu0 0.0
    %512 = vmatprep.subr.mxu0 0.0
    %513 = vmatpush1.msra.mxu0 0.0
    %514 = vmatprep.subr.mxu0 0.0
    %515 = vmatpush1.msra.mxu0 0.0
    %516 = vmatprep.subr.mxu0 0.0
    %517 = vmatpush1.msra.mxu0 0.0
    %518 = vmatprep.subr.mxu0 0.0
    %519 = vmatpush1.msra.mxu0 0.0
    %520 = vmatprep.subr.mxu0 0.0
    %521 = vmatpush1.msra.mxu0 0.0
    %522 = vmatprep.subr.mxu0 0.0
    %523 = vmatpush1.msra.mxu0 0.0
    %524 = vmatprep.subr.mxu0 0.0
    %525 = vmatpush1.msra.mxu0 0.0
    %526 = vmatprep.subr.mxu0 0.0
    %527 = vmatpush1.msra.mxu0 0.0
    %528 = vmatprep.subr.mxu0 0.0
    %529 = vmatpush1.msra.mxu0 0.0
    %530 = vmatprep.subr.mxu0 0.0
    %531 = vmatpush1.msra.mxu0 0.0
    %532 = vmatprep.subr.mxu0 0.0
    %533 = vmatpush1.msra.mxu0 0.0
    %534 = vmatprep.subr.mxu0 0.0
    %535 = vmatpush1.msra.mxu0 0.0
    %536 = vmatprep.subr.mxu0 0.0
    %537 = vmatpush1.msra.mxu0 0.0
    %538 = vmatprep.subr.mxu0 0.0
    %539 = vmatpush1.msra.mxu0 0.0
    %540 = vmatprep.subr.mxu0 0.0
    %541 = vmatpush1.msra.mxu0 0.0
    %542 = vmatprep.subr.mxu0 0.0
    %543 = vmatpush1.msra.mxu0 0.0
    %544 = vmatprep.subr.mxu0 0.0
    %545 = vmatpush1.msra.mxu0 0.0
    %546 = vmatprep.subr.mxu0 0.0
    %547 = vmatpush1.msra.mxu0 0.0
    %548 = vmatprep.subr.mxu0 0.0
    %549 = vmatpush1.msra.mxu0 0.0
    %550 = vmatprep.mubr.f32.mxu0 0.0
    %551 = vmatmul.mubr.f32.gmra.mrb[0].mxu0 %v484
    %v552 = vpop.f32.mrb[0].mxu0
    %v553 = vadd.f32 0.0, %v552
    %v554 = vpop.f32.mrb[0].mxu0
    %555 = vdwg.mxu0
    %v557 = vrot.slane %v553, 3
    %v559 = vadd.f32 %v158, %v557
    %v560 = vtanh.pop %v559
    %v562 = vrot.slane %v560, 5
    %v563 = vsel %vm166, %v562, 0
    %565 = vmatprep.subr.mxu0 0.0
    %566 = vmatpush1.msra.mxu0 %v161
    %567 = vmatprep.subr.mxu0 0.0
    %568 = vmatpush1.msra.mxu0 %v162
    %569 = vmatprep.subr.mxu0 0.0
    %570 = vmatpush1.msra.mxu0 %v163
    %571 = vmatprep.subr.mxu0 0.0
    %572 = vmatpush1.msra.mxu0 %v164
    %573 = vmatprep.subr.mxu0 0.0
    %574 = vmatpush1.msra.mxu0 0.0
    %575 = vmatprep.subr.mxu0 0.0
    %576 = vmatpush1.msra.mxu0 0.0
    %577 = vmatprep.subr.mxu0 0.0
    %578 = vmatpush1.msra.mxu0 0.0
    %579 = vmatprep.subr.mxu0 0.0
    %580 = vmatpush1.msra.mxu0 0.0
    %581 = vmatprep.subr.mxu0 0.0
    %582 = vmatpush1.msra.mxu0 0.0
    %583 = vmatprep.subr.mxu0 0.0
    %584 = vmatpush1.msra.mxu0 0.0
    %585 = vmatprep.subr.mxu0 0.0
    %586 = vmatpush1.msra.mxu0 0.0
    %587 = vmatprep.subr.mxu0 0.0
    %588 = vmatpush1.msra.mxu0 0.0
    %589 = vmatprep.subr.mxu0 0.0
    %590 = vmatpush1.msra.mxu0 0.0
    %591 = vmatprep.subr.mxu0 0.0
    %592 = vmatpush1.msra.mxu0 0.0
    %593 = vmatprep.subr.mxu0 0.0
    %594 = vmatpush1.msra.mxu0 0.0
    %595 = vmatprep.subr.mxu0 0.0
    %596 = vmatpush1.msra.mxu0 0.0
    %597 = vmatprep.subr.mxu0 0.0
    %598 = vmatpush1.msra.mxu0 0.0
    %599 = vmatprep.subr.mxu0 0.0
    %600 = vmatpush1.msra.mxu0 0.0
    %601 = vmatprep.subr.mxu0 0.0
    %602 = vmatpush1.msra.mxu0 0.0
    %603 = vmatprep.subr.mxu0 0.0
    %604 = vmatpush1.msra.mxu0 0.0
    %605 = vmatprep.subr.mxu0 0.0
    %606 = vmatpush1.msra.mxu0 0.0
    %607 = vmatprep.subr.mxu0 0.0
    %608 = vmatpush1.msra.mxu0 0.0
    %609 = vmatprep.subr.mxu0 0.0
    %610 = vmatpush1.msra.mxu0 0.0
    %611 = vmatprep.subr.mxu0 0.0
    %612 = vmatpush1.msra.mxu0 0.0
    %613 = vmatprep.subr.mxu0 0.0
    %614 = vmatpush1.msra.mxu0 0.0
    %615 = vmatprep.subr.mxu0 0.0
    %616 = vmatpush1.msra.mxu0 0.0
    %617 = vmatprep.subr.mxu0 0.0
    %618 = vmatpush1.msra.mxu0 0.0
    %619 = vmatprep.subr.mxu0 0.0
    %620 = vmatpush1.msra.mxu0 0.0
    %621 = vmatprep.subr.mxu0 0.0
    %622 = vmatpush1.msra.mxu0 0.0
    %623 = vmatprep.subr.mxu0 0.0
    %624 = vmatpush1.msra.mxu0 0.0
    %625 = vmatprep.subr.mxu0 0.0
    %626 = vmatpush1.msra.mxu0 0.0
    %627 = vmatprep.subr.mxu0 0.0
    %628 = vmatpush1.msra.mxu0 0.0
    %629 = vmatprep.mubr.f32.mxu0 0.0
    %630 = vmatmul.mubr.f32.gmra.mrb[0].mxu0 %v563
    %v631 = vpop.f32.mrb[0].mxu0
    %v632 = vadd.f32 0.0, %v631
    %v633 = vpop.f32.mrb[0].mxu0
    %634 = vdwg.mxu0
    %v636 = vrot.slane %v632, 2
    %v638 = vadd.f32 %v158, %v636
    %v639 = vtanh.pop %v638
    %v641 = vrot.slane %v639, 6
    %v642 = vsel %vm166, %v641, 0
    %644 = vmatprep.subr.mxu0 0.0
    %645 = vmatpush1.msra.mxu0 %v161
    %646 = vmatprep.subr.mxu0 0.0
    %647 = vmatpush1.msra.mxu0 %v162
    %648 = vmatprep.subr.mxu0 0.0
    %649 = vmatpush1.msra.mxu0 %v163
    %650 = vmatprep.subr.mxu0 0.0
    %651 = vmatpush1.msra.mxu0 %v164
    %652 = vmatprep.subr.mxu0 0.0
    %653 = vmatpush1.msra.mxu0 0.0
    %654 = vmatprep.subr.mxu0 0.0
    %655 = vmatpush1.msra.mxu0 0.0
    %656 = vmatprep.subr.mxu0 0.0
    %657 = vmatpush1.msra.mxu0 0.0
    %658 = vmatprep.subr.mxu0 0.0
    %659 = vmatpush1.msra.mxu0 0.0
    %660 = vmatprep.subr.mxu0 0.0
    %661 = vmatpush1.msra.mxu0 0.0
    %662 = vmatprep.subr.mxu0 0.0
    %663 = vmatpush1.msra.mxu0 0.0
    %664 = vmatprep.subr.mxu0 0.0
    %665 = vmatpush1.msra.mxu0 0.0
    %666 = vmatprep.subr.mxu0 0.0
    %667 = vmatpush1.msra.mxu0 0.0
    %668 = vmatprep.subr.mxu0 0.0
    %669 = vmatpush1.msra.mxu0 0.0
    %670 = vmatprep.subr.mxu0 0.0
    %671 = vmatpush1.msra.mxu0 0.0
    %672 = vmatprep.subr.mxu0 0.0
    %673 = vmatpush1.msra.mxu0 0.0
    %674 = vmatprep.subr.mxu0 0.0
    %675 = vmatpush1.msra.mxu0 0.0
    %676 = vmatprep.subr.mxu0 0.0
    %677 = vmatpush1.msra.mxu0 0.0
    %678 = vmatprep.subr.mxu0 0.0
    %679 = vmatpush1.msra.mxu0 0.0
    %680 = vmatprep.subr.mxu0 0.0
    %681 = vmatpush1.msra.mxu0 0.0
    %682 = vmatprep.subr.mxu0 0.0
    %683 = vmatpush1.msra.mxu0 0.0
    %684 = vmatprep.subr.mxu0 0.0
    %685 = vmatpush1.msra.mxu0 0.0
    %686 = vmatprep.subr.mxu0 0.0
    %687 = vmatpush1.msra.mxu0 0.0
    %688 = vmatprep.subr.mxu0 0.0
    %689 = vmatpush1.msra.mxu0 0.0
    %690 = vmatprep.subr.mxu0 0.0
    %691 = vmatpush1.msra.mxu0 0.0
    %692 = vmatprep.subr.mxu0 0.0
    %693 = vmatpush1.msra.mxu0 0.0
    %694 = vmatprep.subr.mxu0 0.0
    %695 = vmatpush1.msra.mxu0 0.0
    %696 = vmatprep.subr.mxu0 0.0
    %697 = vmatpush1.msra.mxu0 0.0
    %698 = vmatprep.subr.mxu0 0.0
    %699 = vmatpush1.msra.mxu0 0.0
    %700 = vmatprep.subr.mxu0 0.0
    %701 = vmatpush1.msra.mxu0 0.0
    %702 = vmatprep.subr.mxu0 0.0
    %703 = vmatpush1.msra.mxu0 0.0
    %704 = vmatprep.subr.mxu0 0.0
    %705 = vmatpush1.msra.mxu0 0.0
    %706 = vmatprep.subr.mxu0 0.0
    %707 = vmatpush1.msra.mxu0 0.0
    %708 = vmatprep.mubr.f32.mxu0 0.0
    %709 = vmatmul.mubr.f32.gmra.mrb[0].mxu0 %v642
    %v710 = vpop.f32.mrb[0].mxu0
    %v711 = vadd.f32 0.0, %v710
    %v712 = vpop.f32.mrb[0].mxu0
    %713 = vdwg.mxu0
    %v715 = vrot.slane %v711, 1
    %v717 = vadd.f32 %v158, %v715
    %v718 = vtanh.pop %v717
    %vm719 = vcmask 1040384
    %v720 = vsel %vm719, %v165, %v244
    %vm721 = vcmask 1041408
    %v722 = vsel %vm721, %v720, %v323
    %vm723 = vcmask 1042432
    %v724 = vsel %vm723, %v722, %v402
    %vm725 = vcmask 1043456
    %v726 = vsel %vm725, %v724, %v481
    %vm727 = vcmask 1044480
    %v728 = vsel %vm727, %v726, %v560
    %vm729 = vcmask 1045504
    %v730 = vsel %vm729, %v728, %v639
    %vm731 = vcmask 1046528
    %v732 = vsel %vm731, %v730, %v718
    %v733 = vld [vmem:[#allocation8] sm:$0xff]
    %v734 = vld [vmem:[#allocation8 + $0x8] sm:$0xff]
    %v735 = vld [vmem:[#allocation8 + $0x10] sm:$0xff]
    %v736 = vld [vmem:[#allocation8 + $0x18] sm:$0xff]
    %v737 = vld [vmem:[%s5] sm:$0x1]
    %v739 = vlaneseq
    %v740 = vshrl.u32 %v739, 7
    %v741 = vsub.s32 0, %v740
    %v742 = vrot.slane %v737, %v741
    %v745 = vsel %vm166, %v732, 0
    %747 = vmatprep.subr.mxu0 0.0
    %748 = vmatpush1.msra.mxu0 %v733
    %749 = vmatprep.subr.mxu0 0.0
    %750 = vmatpush1.msra.mxu0 %v734
    %751 = vmatprep.subr.mxu0 0.0
    %752 = vmatpush1.msra.mxu0 %v735
    %753 = vmatprep.subr.mxu0 0.0
    %754 = vmatpush1.msra.mxu0 %v736
    %755 = vmatprep.subr.mxu0 0.0
    %756 = vmatpush1.msra.mxu0 0.0
    %757 = vmatprep.subr.mxu0 0.0
    %758 = vmatpush1.msra.mxu0 0.0
    %759 = vmatprep.subr.mxu0 0.0
    %760 = vmatpush1.msra.mxu0 0.0
    %761 = vmatprep.subr.mxu0 0.0
    %762 = vmatpush1.msra.mxu0 0.0
    %763 = vmatprep.subr.mxu0 0.0
    %764 = vmatpush1.msra.mxu0 0.0
    %765 = vmatprep.subr.mxu0 0.0
    %766 = vmatpush1.msra.mxu0 0.0
    %767 = vmatprep.subr.mxu0 0.0
    %768 = vmatpush1.msra.mxu0 0.0
    %769 = vmatprep.subr.mxu0 0.0
    %770 = vmatpush1.msra.mxu0 0.0
    %771 = vmatprep.subr.mxu0 0.0
    %772 = vmatpush1.msra.mxu0 0.0
    %773 = vmatprep.subr.mxu0 0.0
    %774 = vmatpush1.msra.mxu0 0.0
    %775 = vmatprep.subr.mxu0 0.0
    %776 = vmatpush1.msra.mxu0 0.0
    %777 = vmatprep.subr.mxu0 0.0
    %778 = vmatpush1.msra.mxu0 0.0
    %779 = vmatprep.subr.mxu0 0.0
    %780 = vmatpush1.msra.mxu0 0.0
    %781 = vmatprep.subr.mxu0 0.0
    %782 = vmatpush1.msra.mxu0 0.0
    %783 = vmatprep.subr.mxu0 0.0
    %784 = vmatpush1.msra.mxu0 0.0
    %785 = vmatprep.subr.mxu0 0.0
    %786 = vmatpush1.msra.mxu0 0.0
    %787 = vmatprep.subr.mxu0 0.0
    %788 = vmatpush1.msra.mxu0 0.0
    %789 = vmatprep.subr.mxu0 0.0
    %790 = vmatpush1.msra.mxu0 0.0
    %791 = vmatprep.subr.mxu0 0.0
    %792 = vmatpush1.msra.mxu0 0.0
    %793 = vmatprep.subr.mxu0 0.0
    %794 = vmatpush1.msra.mxu0 0.0
    %795 = vmatprep.subr.mxu0 0.0
    %796 = vmatpush1.msra.mxu0 0.0
    %797 = vmatprep.subr.mxu0 0.0
    %798 = vmatpush1.msra.mxu0 0.0
    %799 = vmatprep.subr.mxu0 0.0
    %800 = vmatpush1.msra.mxu0 0.0
    %801 = vmatprep.subr.mxu0 0.0
    %802 = vmatpush1.msra.mxu0 0.0
    %803 = vmatprep.subr.mxu0 0.0
    %804 = vmatpush1.msra.mxu0 0.0
    %805 = vmatprep.subr.mxu0 0.0
    %806 = vmatpush1.msra.mxu0 0.0
    %807 = vmatprep.subr.mxu0 0.0
    %808 = vmatpush1.msra.mxu0 0.0
    %809 = vmatprep.subr.mxu0 0.0
    %810 = vmatpush1.msra.mxu0 0.0
    %811 = vmatprep.mubr.f32.mxu0 0.0
    %812 = vmatmul.mubr.f32.gmra.mrb[0].mxu0 %v745
    %v813 = vpop.f32.mrb[0].mxu0
    %v814 = vadd.f32 %v742, %v813
    %v815 = vpop.f32.mrb[0].mxu0
    %816 = vdwg.mxu0
    %817 = vst [vmem:[#allocation10] sm:$0xff] %v814
    // Predicated region
    $region42: #{simple_rnn_forward.1} parent=1 // pred_check
      _
    $region43: #{simple_rnn_forward.1} parent=1 // pred_check_branch
      %819 = sbr.rel (0) target = $region45
    $region44: #{simple_rnn_forward.1} parent=1 // pred_region
      %s821 = ssub.s32 128, 128
      %822 = vsyncadd [#allocation4], %s821
      %s824 = sshll.u32 [#allocation10], 4
      %s825 = int_to_ptr.vmem [resolvable:$true] %s824
      %827 = dma.vmem_to_hbm [thread:$0]  %s825, 128, %s6, [#allocation4]
    $region45: #{simple_rnn_forward.1} parent=1 // pred_fallthru
      _
    // Predicated region
    $region46: #{simple_rnn_forward.1} parent=1 // pred_check
      _
    $region47: #{simple_rnn_forward.1} parent=1 // pred_check_branch
      %829 = sbr.rel (0) target = $region49
    $region48: #{simple_rnn_forward.1} parent=1 // pred_region
      %830 = dma.done [#allocation4], 128
    $region49: #{simple_rnn_forward.1} parent=1 // pred_fallthru
      _
    %831 = vsyncpa [#allocation3], 1
    %832 = vsyncpa [#allocation6], 1
    %833 = vsyncpa [#allocation9], 1
    %834 = vsyncpa [#allocation4], 1

</llo_original>
